<compile_context>
chip_gen: v6e
topology: v6e:2x2x1
jax: 0.10.0
libtpu: 0.0.40
codegen_flags: <defaults>
</compile_context>

<pallas_src>
import jax
import jax.numpy as jnp
from jax import lax
from jax.experimental import pallas as pl
from jax.experimental.pallas import tpu as pltpu

EPS = 1e-5
LANE = 128


def _round_up(x, m):
    return (x + m - 1) // m * m


def _vmem_budget_bytes():
    """Scoped-VMEM budget: ~3/4 of physical, capped at 96 MiB.

    Evaluates to ~96 MiB on v5e/v6e (128 MiB physical), ~48 MiB on v7x
    (64 MiB physical) and on the conservative fallback.
    """
    phys = None
    try:
        info = pltpu.get_tpu_info()
        phys = int(getattr(info, "vmem_capacity_bytes", 0)) or None
    except Exception:
        phys = None
    if phys is None:
        phys = 64 * 1024 * 1024          # conservative: v7x per-core VMEM
    return int(min(phys * 3 // 4, 96 * 1024 * 1024))


# ---------------------------------------------------------------------------
# Pass 1: conv matmul per M tile; write y (f32) out; accumulate per-channel
#         sum / sum-of-squares into a resident (1, 8, Cp) stats block.
# ---------------------------------------------------------------------------
def _conv_stats_kernel(xcol_ref, w_ref, y_ref, stats_ref):
    # xcol_ref : (TM, Kp) bf16 tile
    # w_ref    : (Kp, Cp) bf16, whole-array VMEM resident (single-buffered)
    # y_ref    : (TM, Cp) f32 output tile
    # stats_ref: (1, 8, Cp) f32, resident across the reduction axis
    #            (row 0 = sum, row 1 = sum of squares, rows 2..7 padding)
    @pl.when(pl.program_id(1) == 0)
    def _init():
        stats_ref[...] = jnp.zeros_like(stats_ref)

    y = jnp.dot(xcol_ref[...], w_ref[...], preferred_element_type=jnp.float32)
    y_ref[...] = y
    # Two single-row adds (no sublane concat / relayout).
    stats_ref[:, 0:1, :] += jnp.sum(y, axis=0, keepdims=True)[None]
    stats_ref[:, 1:2, :] += jnp.sum(y * y, axis=0, keepdims=True)[None]


# ---------------------------------------------------------------------------
# Pass 2: pure elementwise folded BatchNorm:  out = y * scale + shift.
# ---------------------------------------------------------------------------
def _bn_apply_kernel(y_ref, scale_ref, shift_ref, out_ref):
    # y_ref: (TM, Cp) f32; scale_ref/shift_ref: (1, Cp) f32 VMEM-resident.
    out_ref[...] = y_ref[...] * scale_ref[...] + shift_ref[...]


# ---------------------------------------------------------------------------
# im2col (XLA wrapper side) — row ordering matches PyTorch OIHW weight layout.
# ---------------------------------------------------------------------------
def _im2col_nchw(x, kh, kw, stride, padding, dilation):
    """x: (N, C, H, W) -> patches (N*OH*OW, C*KH*KW), plus (OH, OW)."""
    n, c, h, w = x.shape
    sh, sw = stride
    ph, pw = padding
    dh, dw = dilation
    x_pad = jnp.pad(x, ((0, 0), (0, 0), (ph, ph), (pw, pw)))
    hp, wp = h + 2 * ph, w + 2 * pw
    oh = (hp - dh * (kh - 1) - 1) // sh + 1
    ow = (wp - dw * (kw - 1) - 1) // sw + 1

    rows = []
    for i in range(kh):
        cols = []
        for j in range(kw):
            patch = x_pad[
                :,
                :,
                i * dh : i * dh + (oh - 1) * sh + 1 : sh,
                j * dw : j * dw + (ow - 1) * sw + 1 : sw,
            ]  # (N, C, OH, OW)
            cols.append(patch)
        rows.append(jnp.stack(cols, axis=2))              # (N, C, KW, OH, OW)
    patches = jnp.stack(rows, axis=2)                     # (N, C, KH, KW, OH, OW)
    # -> (N, OH, OW, C, KH, KW) so flattening matches PyTorch weight layout.
    patches = jnp.transpose(patches, (0, 4, 5, 1, 2, 3))
    xcol = patches.reshape(n * oh * ow, c * kh * kw)
    return xcol, oh, ow


def conv_bn(x, weight, bias, gamma, beta, *, stride=1, padding=0, dilation=1,
            groups=1, block_m=None, out_layout="NCHW"):
    """ConvBN forward. x: (N, C_in, H, W) NCHW, weight: (C_out, C_in, KH, KW)."""
    assert groups == 1, "TODO(synk): grouped convolution not implemented"
    assert out_layout in ("NCHW", "NHWC")
    if isinstance(stride, int):
        stride = (stride, stride)
    if isinstance(padding, int):
        padding = (padding, padding)
    if isinstance(dilation, int):
        dilation = (dilation, dilation)

    n, c_in, h, w = x.shape
    c_out, _, kh, kw = weight.shape

    xcol, oh, ow = _im2col_nchw(x, kh, kw, stride, padding, dilation)
    m, k = xcol.shape

    # Lane-pad K and C_out (full MXU contraction tiles, lane-dense stores).
    kp = _round_up(k, LANE)
    cp = _round_up(c_out, LANE)

    # --- VMEM budget -> row-tile size ---------------------------------------
    vmem_limit = _vmem_budget_bytes()
    if block_m is None:
        usable = int(vmem_limit * 0.7) - kp * cp * 2      # minus resident weight
        tm = usable // (4 * kp + 12 * cp)                 # dbuf xcol + dbuf y + temp
        tm = max(8, min((tm // 8) * 8, 1024))
    else:
        tm = max(8, _round_up(block_m, 8))
    tm = min(tm, _round_up(m, 8))

    num_tiles = -(-m // tm)                 # cdiv
    n_par = 2 if num_tiles >= 2 else 1      # megacore split for pass 1 (v7x)
    t2 = -(-num_tiles // n_par)
    mp = n_par * t2 * tm
    total_tiles = n_par * t2

    # Zero-padded rows contribute 0 to both BN sums, so statistics stay exact
    # as long as we divide by the true M.
    xcol_p = jnp.pad(xcol, ((0, mp - m), (0, kp - k))).astype(jnp.bfloat16)
    w_mat = weight.reshape(c_out, c_in * kh * kw).T                # (K, C_out)
    w_p = jnp.pad(w_mat, ((0, kp - k), (0, cp - c_out))).astype(jnp.bfloat16)

    row_map = lambda c, i: (c * t2 + i, 0)
    resident_vmem = pl.BlockSpec(memory_space=pltpu.MemorySpace.VMEM)

    # ---- Pass 1: matmul, write y once, stream per-channel sum / sumsq ------
    y_flat, stats = pl.pallas_call(
        _conv_stats_kernel,
        out_shape=(
            jax.ShapeDtypeStruct((mp, cp), jnp.float32),
            jax.ShapeDtypeStruct((n_par, 8, cp), jnp.float32),
        ),
        grid=(n_par, t2),
        in_specs=[
            pl.BlockSpec((tm, kp), row_map),
            resident_vmem,                                   # weight, 1 buffer
        ],
        out_specs=(
            pl.BlockSpec((tm, cp), row_map),
            pl.BlockSpec((1, 8, cp), lambda c, i: (c, 0, 0)),
        ),
        compiler_params=pltpu.CompilerParams(
            dimension_semantics=("parallel", "arbitrary"),
            vmem_limit_bytes=vmem_limit,
        ),
        cost_estimate=pl.CostEstimate(
            flops=2 * mp * kp * cp,
            transcendentals=0,
            bytes_accessed=mp * kp * 2 + kp * cp * 2 + mp * cp * 4 + n_par * 8 * cp * 4,
        ),
    )(xcol_p, w_p)

    # ---- Fold BN stats + affine into one scale / shift per channel ---------
    # Training-mode BN subtracts the batch mean, so the conv bias cancels
    # exactly: (y + b) - E[y + b] == y - E[y].  `bias` is accepted for
    # interface parity with nn.Conv2d(bias=True); it MUST NOT be dropped if
    # this code is ever reused with eval-mode (running-stats) BatchNorm.
    del bias

    stats_sum = jnp.sum(stats, axis=0)                      # (8, cp)
    count = jnp.float32(m)
    mean = stats_sum[0] / count                             # (cp,)
    var = jnp.maximum(stats_sum[1] / count - mean * mean, 0.0)   # biased variance
    inv_std = lax.rsqrt(var + EPS)
    gamma_p = jnp.pad(gamma.astype(jnp.float32), (0, cp - c_out))
    beta_p = jnp.pad(beta.astype(jnp.float32), (0, cp - c_out))
    scale_v = gamma_p * inv_std
    shift_v = beta_p - mean * scale_v
    scale = scale_v.reshape(1, cp)
    shift = shift_v.reshape(1, cp)

    # ---- Pass 2: pure elementwise y*scale + shift (fully parallel) ---------
    out_flat = pl.pallas_call(
        _bn_apply_kernel,
        out_shape=jax.ShapeDtypeStruct((mp, cp), jnp.float32),
        grid=(total_tiles,),
        in_specs=[
            pl.BlockSpec((tm, cp), lambda i: (i, 0)),
            resident_vmem,                                   # scale, 1 buffer
            resident_vmem,                                   # shift, 1 buffer
        ],
        out_specs=pl.BlockSpec((tm, cp), lambda i: (i, 0)),
        compiler_params=pltpu.CompilerParams(
            dimension_semantics=("parallel",),
            vmem_limit_bytes=vmem_limit,
        ),
        cost_estimate=pl.CostEstimate(
            flops=2 * mp * cp,
            transcendentals=0,
            bytes_accessed=2 * mp * cp * 4 + 2 * cp * 4,
        ),
    )(y_flat, scale, shift)

    # ---- Epilogue -----------------------------------------------------------
    out_nhwc = out_flat[:m, :c_out].reshape(n, oh, ow, c_out)
    if out_layout == "NHWC":
        return out_nhwc
    # TODO(synk): fold this transpose into pass 2 (per-sample tiles + in-kernel
    # transpose) or have consumers take NHWC — it is an extra full HBM round
    # trip of the output for NCHW consumers.
    return out_nhwc.transpose(0, 3, 1, 2)


def _reference(x, weight, bias, gamma, beta, *, stride, padding, dilation):
    """Pure-JAX reference: lax conv + training-mode (batch-stats) BN."""
    y = lax.conv_general_dilated(
        x, weight,
        window_strides=(stride, stride),
        padding=((padding, padding), (padding, padding)),
        rhs_dilation=(dilation, dilation),
        dimension_numbers=("NCHW", "OIHW", "NCHW"),
    ) + bias.reshape(1, -1, 1, 1)
    mean = jnp.mean(y, axis=(0, 2, 3), keepdims=True)
    var = jnp.mean((y - mean) ** 2, axis=(0, 2, 3), keepdims=True)
    return (y - mean) * lax.rsqrt(var + EPS) * gamma.reshape(1, -1, 1, 1) \
        + beta.reshape(1, -1, 1, 1)


if __name__ == "__main__":
    # ConvBN(channel_in=4, channel_out=8, kernel_size=3, stride=1, padding=1)
    N, C_IN, H, W = 2, 4, 16, 16
    C_OUT, KH, KW = 8, 3, 3
    STRIDE, PADDING, DILATION = 1, 1, 1

    key = jax.random.PRNGKey(0)
    kx, kw_, kb, kg, kbe = jax.random.split(key, 5)

    x = jax.random.normal(kx, (N, C_IN, H, W), dtype=jnp.float32)
    weight = jax.random.normal(kw_, (C_OUT, C_IN, KH, KW), dtype=jnp.float32) * 0.1
    bias = jax.random.normal(kb, (C_OUT,), dtype=jnp.float32) * 0.1
    gamma = 1.0 + 0.1 * jax.random.normal(kg, (C_OUT,), dtype=jnp.float32)
    beta = 0.1 * jax.random.normal(kbe, (C_OUT,), dtype=jnp.float32)

    # The kernel feeds the MXU bf16 operands; snap the test inputs to
    # bf16-representable values so the f32 reference sees identical numbers
    # and the comparison isolates the kernel's arithmetic (not quantization).
    x = x.astype(jnp.bfloat16).astype(jnp.float32)
    weight = weight.astype(jnp.bfloat16).astype(jnp.float32)

    out = conv_bn(x, weight, bias, gamma, beta,
                  stride=STRIDE, padding=PADDING, dilation=DILATION)
    out = jax.block_until_ready(out)

    ref = _reference(x, weight, bias, gamma, beta,
                     stride=STRIDE, padding=PADDING, dilation=DILATION)
    assert out.shape == (N, C_OUT, H, W)
    err = float(jnp.max(jnp.abs(out - ref)))
    assert jnp.allclose(out, ref, rtol=1e-3, atol=1e-3), err

    print("KERNEL_OK")
</pallas_src>

<mosaic_0001>
module attributes {stable_mosaic.version = 11 : i64} {
  func.func @_conv_stats_kernel(%arg0: i32, %arg1: i32, %arg2: memref<512x128xbf16, #tpu.memory_space<vmem>>, %arg3: memref<128x128xbf16, #tpu.memory_space<vmem>>, %arg4: memref<512x128xf32, #tpu.memory_space<vmem>>, %arg5: memref<1x8x128xf32, #tpu.memory_space<vmem>>) attributes {dimension_semantics = [#tpu.dimension_semantics<parallel>, #tpu.dimension_semantics<arbitrary>], iteration_bounds = array<i64: 1, 1>, scalar_prefetch = 0 : i64, scratch_operands = 0 : i64, tpu.core_type = #tpu.core_type<tc>, window_params = [{transform_indices = @transform_0, window_bounds = array<i64: 512, 128>}, {pipeline_mode = #tpu.pipeline_mode<synchronous>, transform_indices = @transform_1, window_bounds = array<i64: 128, 128>}, {transform_indices = @transform_2, window_bounds = array<i64: 512, 128>}, {transform_indices = @transform_3, window_bounds = array<i64: 1, 8, 128>}]} {
    %c0_i32 = arith.constant 0 : i32
    %0 = arith.cmpi eq, %arg1, %c0_i32 : i32
    %1 = arith.extui %0 : i1 to i32
    %c0_i32_0 = arith.constant 0 : i32
    %2 = arith.cmpi ne, %1, %c0_i32_0 : i32
    scf.if %2 {
      %cst_19 = arith.constant 0.000000e+00 : f32
      %20 = vector.broadcast %cst_19 : f32 to vector<1x8x128xf32>
      %c0_20 = arith.constant 0 : index
      %c0_21 = arith.constant 0 : index
      %c0_22 = arith.constant 0 : index
      %21 = vector.load %arg5[%c0_20, %c0_21, %c0_22] : memref<1x8x128xf32, #tpu.memory_space<vmem>>, vector<1x8x128xf32>
      tpu.vector_store %arg5[%c0_20, %c0_21, %c0_22], %20 {strides = array<i32>} : memref<1x8x128xf32, #tpu.memory_space<vmem>>, vector<1x8x128xf32>,
    } else {
    }
    %c0 = arith.constant 0 : index
    %c0_1 = arith.constant 0 : index
    %3 = vector.load %arg2[%c0, %c0_1] : memref<512x128xbf16, #tpu.memory_space<vmem>>, vector<512x128xbf16>
    %c0_2 = arith.constant 0 : index
    %c0_3 = arith.constant 0 : index
    %4 = vector.load %arg3[%c0_2, %c0_3] : memref<128x128xbf16, #tpu.memory_space<vmem>>, vector<128x128xbf16>
    %cst = arith.constant dense<0.000000e+00> : vector<512x128xf32>
    %5 = tpu.matmul %3, %4, %cst {dimension_numbers = #tpu.dot_dimension_numbers<[1], [0], [0], [1], [0, 0, 1, 1], [], []>} : vector<512x128xbf16>, vector<128x128xbf16>, vector<512x128xf32> -> vector<512x128xf32>
    %c0_4 = arith.constant 0 : index
    %c0_5 = arith.constant 0 : index
    %6 = vector.load %arg4[%c0_4, %c0_5] : memref<512x128xf32, #tpu.memory_space<vmem>>, vector<512x128xf32>
    tpu.vector_store %arg4[%c0_4, %c0_5], %5 {strides = array<i32>} : memref<512x128xf32, #tpu.memory_space<vmem>>, vector<512x128xf32>,
    %c0_6 = arith.constant 0 : index
    %c0_7 = arith.constant 0 : index
    %c0_8 = arith.constant 0 : index
    %7 = vector.load %arg5[%c0_6, %c0_7, %c0_8] : memref<1x8x128xf32, #tpu.memory_space<vmem>>, vector<1x1x128xf32>
    %cst_9 = arith.constant dense<0.000000e+00> : vector<128xf32>
    %8 = vector.multi_reduction <add>, %5, %cst_9 [0] : vector<512x128xf32> to vector<128xf32>
    %9 = vector.shape_cast %8 : vector<128xf32> to vector<1x128xf32>
    %10 = vector.shape_cast %9 : vector<1x128xf32> to vector<1x1x128xf32>
    %11 = arith.addf %7, %10 : vector<1x1x128xf32>
    %c0_10 = arith.constant 0 : index
    %c0_11 = arith.constant 0 : index
    %c0_12 = arith.constant 0 : index
    %12 = vector.load %arg5[%c0_10, %c0_11, %c0_12] : memref<1x8x128xf32, #tpu.memory_space<vmem>>, vector<1x1x128xf32>
    tpu.vector_store %arg5[%c0_10, %c0_11, %c0_12], %11 {strides = array<i32>} : memref<1x8x128xf32, #tpu.memory_space<vmem>>, vector<1x1x128xf32>,
    %c0_13 = arith.constant 0 : index
    %c1 = arith.constant 1 : index
    %c0_14 = arith.constant 0 : index
    %13 = vector.load %arg5[%c0_13, %c1, %c0_14] : memref<1x8x128xf32, #tpu.memory_space<vmem>>, vector<1x1x128xf32>
    %14 = arith.mulf %5, %5 : vector<512x128xf32>
    %cst_15 = arith.constant dense<0.000000e+00> : vector<128xf32>
    %15 = vector.multi_reduction <add>, %14, %cst_15 [0] : vector<512x128xf32> to vector<128xf32>
    %16 = vector.shape_cast %15 : vector<128xf32> to vector<1x128xf32>
    %17 = vector.shape_cast %16 : vector<1x128xf32> to vector<1x1x128xf32>
    %18 = arith.addf %13, %17 : vector<1x1x128xf32>
    %c0_16 = arith.constant 0 : index
    %c1_17 = arith.constant 1 : index
    %c0_18 = arith.constant 0 : index
    %19 = vector.load %arg5[%c0_16, %c1_17, %c0_18] : memref<1x8x128xf32, #tpu.memory_space<vmem>>, vector<1x1x128xf32>
    tpu.vector_store %arg5[%c0_16, %c1_17, %c0_18], %18 {strides = array<i32>} : memref<1x8x128xf32, #tpu.memory_space<vmem>>, vector<1x1x128xf32>,
    return
  }
  func.func @transform_0(%arg0: i32, %arg1: i32) -> (i32, i32) {
    %c1_i32 = arith.constant 1 : i32
    %0 = arith.muli %arg0, %c1_i32 : i32
    %1 = arith.addi %0, %arg1 : i32
    %c0_i32 = arith.constant 0 : i32
    %c0_i32_0 = arith.constant 0 : i32
    return %1, %c0_i32 : i32, i32
  }
  func.func @transform_1(%arg0: i32, %arg1: i32) -> (i32, i32) {
    %c0_i32 = arith.constant 0 : i32
    %c0_i32_0 = arith.constant 0 : i32
    %c0_i32_1 = arith.constant 0 : i32
    return %c0_i32, %c0_i32_0 : i32, i32
  }
  func.func @transform_2(%arg0: i32, %arg1: i32) -> (i32, i32) {
    %c1_i32 = arith.constant 1 : i32
    %0 = arith.muli %arg0, %c1_i32 : i32
    %1 = arith.addi %0, %arg1 : i32
    %c0_i32 = arith.constant 0 : i32
    %c0_i32_0 = arith.constant 0 : i32
    return %1, %c0_i32 : i32, i32
  }
  func.func @transform_3(%arg0: i32, %arg1: i32) -> (i32, i32, i32) {
    %c0_i32 = arith.constant 0 : i32
    %c0_i32_0 = arith.constant 0 : i32
    %c0_i32_1 = arith.constant 0 : i32
    return %arg0, %c0_i32, %c0_i32_0 : i32, i32, i32
  }
}

</mosaic_0001>

<llo_original>
// kernel: tpu_custom_call.1
$region0: #{tpu_custom_call.1}
  #allocation0 [shape = 'u32[]', space=smem, size = 0x4, offset = 0x4, fixed_abs, tag = 'smem constant byte address 0x4 - core index']
  #allocation1 [shape = 'u32[144,128]{1,0:T(1,128)}', space=vmem, size = 0x12000, scoped, tag = 'internal scratch']
  %s0 = inlined_call_operand.hbm [shape: bf16[512,128], index: 0, kind: input, shape index: {}]
  %s1 = inlined_call_operand.hbm [shape: bf16[128,128], index: 1, kind: input, shape index: {}]
  %s2 = inlined_call_operand.hbm [shape: f32[512,128], index: 2, kind: output, shape index: {0}]
  %s3 = inlined_call_operand.hbm [shape: f32[1,8,128], index: 3, kind: output, shape index: {1}]
  %4 = xla_tuple %s2, %s3
  %s5 = sld [smem:[#allocation0]]
  $region38: #{tpu_custom_call.1} parent=0
    _
  %s7 = ssub.s32 1, %s5
  %s8 = scalar_select 0, %s7, %s5
  $region1: #{tpu_custom_call.1} parent=0
    #allocation2 [shape = 'u8[131072]{0}', space=vmem, size = 0x20000, scoped, tag = 'input window, operand 0, single buffered']
    #allocation3 [shape = 's32[1]{0}', space=sflag, size = 0x4, scoped, tag = 'scoped memory for tpu_custom_call.1']
    #allocation4 [shape = 's32[1]{0}', space=sflag, size = 0x4, scoped, tag = 'scoped memory for tpu_custom_call.1']
    #allocation5 [shape = 'u8[32768]{0}', space=vmem, size = 0x8000, scoped, tag = 'input window, operand 1, single buffered']
    #allocation6 [shape = 's32[1]{0}', space=sflag, size = 0x4, scoped, tag = 'scoped memory for tpu_custom_call.1']
    #allocation7 [shape = 'u8[262144]{0}', space=vmem, size = 0x40000, scoped, tag = 'output window, operand 0, single buffered']
    #allocation8 [shape = 'u8[4096]{0}', space=vmem, size = 0x1000, scoped, tag = 'output window, operand 1, single buffered']
    #allocation9 [shape = 's32[1]{0}', space=sflag, size = 0x4, scoped, tag = 'scoped memory for tpu_custom_call.1']
    %9 = vsyncpa [#allocation3], 0
    %10 = vsyncpa [#allocation6], 0
    %11 = vsyncpa [#allocation4], 0
    %12 = vsyncpa [#allocation9], 0
    // Predicated region
    $region2: #{tpu_custom_call.1} parent=1 // pred_check
      _
    $region3: #{tpu_custom_call.1} parent=1 // pred_check_branch
      %14 = sbr.rel (0) target = $region5
    $region4: #{tpu_custom_call.1} parent=1 // pred_region
      %s15 = sadd.s32 0, 0
      %s16 = smul.u32 64, %s15
      %s18 = ssub.s32 4096, 4096
      %19 = vsyncadd [#allocation3], %s18
      %s20 = smul.addr %s16, 64
      %s21 = scalar_lea.hbm %s0, %s20
      %s22 = sshll.u32 [#allocation2], 4
      %s23 = int_to_ptr.vmem [resolvable:$true] %s22
      %28 = dma.hbm_to_vmem [thread:$0]  %s21, 4096, %s23, [#allocation3], 64, 64, 4
    $region5: #{tpu_custom_call.1} parent=1 // pred_fallthru
      _
    // Predicated region
    $region6: #{tpu_custom_call.1} parent=1 // pred_check
      _
    $region7: #{tpu_custom_call.1} parent=1 // pred_check_branch
      %30 = sbr.rel (0) target = $region9
    $region8: #{tpu_custom_call.1} parent=1 // pred_region
      %s32 = ssub.s32 1024, 1024
      %33 = vsyncadd [#allocation6], %s32
      %s34 = sshll.u32 [#allocation5], 4
      %s35 = int_to_ptr.vmem [resolvable:$true] %s34
      %40 = dma.hbm_to_vmem [thread:$0]  %s1, 1024, %s35, [#allocation6], 64, 64, 4
    $region9: #{tpu_custom_call.1} parent=1 // pred_fallthru
      _
    // Predicated region
    $region10: #{tpu_custom_call.1} parent=1 // pred_check
      _
    $region11: #{tpu_custom_call.1} parent=1 // pred_check_branch
      %42 = sbr.rel (0) target = $region13
    $region12: #{tpu_custom_call.1} parent=1 // pred_region
      %43 = dma.done [#allocation3], 4096
    $region13: #{tpu_custom_call.1} parent=1 // pred_fallthru
      _
    // Predicated region
    $region14: #{tpu_custom_call.1} parent=1 // pred_check
      _
    $region15: #{tpu_custom_call.1} parent=1 // pred_check_branch
      %45 = sbr.rel (0) target = $region17
    $region16: #{tpu_custom_call.1} parent=1 // pred_region
      %46 = dma.done [#allocation6], 1024
    $region17: #{tpu_custom_call.1} parent=1 // pred_fallthru
      _
    %s47 = sadd.s32 0, 0
    %s48 = smul.u32 64, %s47
    %s49 = sadd.s32 0, 0
    %s50 = smul.u32 64, %s49
    %p52 = scmp.eq.s32.totalorder 0, 0
    // Predicated region
    $region18: #{tpu_custom_call.1} parent=1 // pred_check
      %p53 = pneg %p52
    $region19: #{tpu_custom_call.1} parent=1 // pred_check_branch
      %55 = sbr.rel (%p53) target = $region21
    $region20: #{tpu_custom_call.1} parent=1 // pred_region
      %56 = vst [vmem:[#allocation8] sm:$0xff] 0.0
    $region21: #{tpu_custom_call.1} parent=1 // pred_fallthru
      _
    %v57 = vld [vmem:[#allocation2] sm:$0xf]
    %v58 = vld [vmem:[#allocation2 + $0x4] sm:$0xf]
    %v59 = vld [vmem:[#allocation2 + $0x8] sm:$0xf]
    %v60 = vld [vmem:[#allocation2 + $0xc] sm:$0xf]
    %v61 = vld [vmem:[#allocation2 + $0x10] sm:$0xf]
    %v62 = vld [vmem:[#allocation2 + $0x14] sm:$0xf]
    %v63 = vld [vmem:[#allocation2 + $0x18] sm:$0xf]
    %v64 = vld [vmem:[#allocation2 + $0x1c] sm:$0xf]
    %v65 = vld [vmem:[#allocation2 + $0x20] sm:$0xf]
    %v66 = vld [vmem:[#allocation2 + $0x24] sm:$0xf]
    %v67 = vld [vmem:[#allocation2 + $0x28] sm:$0xf]
    %v68 = vld [vmem:[#allocation2 + $0x2c] sm:$0xf]
    %v69 = vld [vmem:[#allocation2 + $0x30] sm:$0xf]
    %v70 = vld [vmem:[#allocation2 + $0x34] sm:$0xf]
    %v71 = vld [vmem:[#allocation2 + $0x38] sm:$0xf]
    %v72 = vld [vmem:[#allocation2 + $0x3c] sm:$0xf]
    %v73 = vld [vmem:[#allocation2 + $0x40] sm:$0xf]
    %v74 = vld [vmem:[#allocation2 + $0x44] sm:$0xf]
    %v75 = vld [vmem:[#allocation2 + $0x48] sm:$0xf]
    %v76 = vld [vmem:[#allocation2 + $0x4c] sm:$0xf]
    %v77 = vld [vmem:[#allocation2 + $0x50] sm:$0xf]
    %v78 = vld [vmem:[#allocation2 + $0x54] sm:$0xf]
    %v79 = vld [vmem:[#allocation2 + $0x58] sm:$0xf]
    %v80 = vld [vmem:[#allocation2 + $0x5c] sm:$0xf]
    %v81 = vld [vmem:[#allocation2 + $0x60] sm:$0xf]
    %v82 = vld [vmem:[#allocation2 + $0x64] sm:$0xf]
    %v83 = vld [vmem:[#allocation2 + $0x68] sm:$0xf]
    %v84 = vld [vmem:[#allocation2 + $0x6c] sm:$0xf]
    %v85 = vld [vmem:[#allocation2 + $0x70] sm:$0xf]
    %v86 = vld [vmem:[#allocation2 + $0x74] sm:$0xf]
    %v87 = vld [vmem:[#allocation2 + $0x78] sm:$0xf]
    %v88 = vld [vmem:[#allocation2 + $0x7c] sm:$0xf]
    %v89 = vld [vmem:[#allocation2 + $0x80] sm:$0xf]
    %v90 = vld [vmem:[#allocation2 + $0x84] sm:$0xf]
    %v91 = vld [vmem:[#allocation2 + $0x88] sm:$0xf]
    %v92 = vld [vmem:[#allocation2 + $0x8c] sm:$0xf]
    %v93 = vld [vmem:[#allocation2 + $0x90] sm:$0xf]
    %v94 = vld [vmem:[#allocation2 + $0x94] sm:$0xf]
    %v95 = vld [vmem:[#allocation2 + $0x98] sm:$0xf]
    %v96 = vld [vmem:[#allocation2 + $0x9c] sm:$0xf]
    %v97 = vld [vmem:[#allocation2 + $0xa0] sm:$0xf]
    %v98 = vld [vmem:[#allocation2 + $0xa4] sm:$0xf]
    %v99 = vld [vmem:[#allocation2 + $0xa8] sm:$0xf]
    %v100 = vld [vmem:[#allocation2 + $0xac] sm:$0xf]
    %v101 = vld [vmem:[#allocation2 + $0xb0] sm:$0xf]
    %v102 = vld [vmem:[#allocation2 + $0xb4] sm:$0xf]
    %v103 = vld [vmem:[#allocation2 + $0xb8] sm:$0xf]
    %v104 = vld [vmem:[#allocation2 + $0xbc] sm:$0xf]
    %v105 = vld [vmem:[#allocation2 + $0xc0] sm:$0xf]
    %v106 = vld [vmem:[#allocation2 + $0xc4] sm:$0xf]
    %v107 = vld [vmem:[#allocation2 + $0xc8] sm:$0xf]
    %v108 = vld [vmem:[#allocation2 + $0xcc] sm:$0xf]
    %v109 = vld [vmem:[#allocation2 + $0xd0] sm:$0xf]
    %v110 = vld [vmem:[#allocation2 + $0xd4] sm:$0xf]
    %v111 = vld [vmem:[#allocation2 + $0xd8] sm:$0xf]
    %v112 = vld [vmem:[#allocation2 + $0xdc] sm:$0xf]
    %v113 = vld [vmem:[#allocation2 + $0xe0] sm:$0xf]
    %v114 = vld [vmem:[#allocation2 + $0xe4] sm:$0xf]
    %v115 = vld [vmem:[#allocation2 + $0xe8] sm:$0xf]
    %v116 = vld [vmem:[#allocation2 + $0xec] sm:$0xf]
    %v117 = vld [vmem:[#allocation2 + $0xf0] sm:$0xf]
    %v118 = vld [vmem:[#allocation2 + $0xf4] sm:$0xf]
    %v119 = vld [vmem:[#allocation2 + $0xf8] sm:$0xf]
    %v120 = vld [vmem:[#allocation2 + $0xfc] sm:$0xf]
    %v121 = vld [vmem:[#allocation5] sm:$0xf]
    %v122 = vld [vmem:[#allocation5 + $0x4] sm:$0xf]
    %v123 = vld [vmem:[#allocation5 + $0x8] sm:$0xf]
    %v124 = vld [vmem:[#allocation5 + $0xc] sm:$0xf]
    %v125 = vld [vmem:[#allocation5 + $0x10] sm:$0xf]
    %v126 = vld [vmem:[#allocation5 + $0x14] sm:$0xf]
    %v127 = vld [vmem:[#allocation5 + $0x18] sm:$0xf]
    %v128 = vld [vmem:[#allocation5 + $0x1c] sm:$0xf]
    %v129 = vld [vmem:[#allocation5 + $0x20] sm:$0xf]
    %v130 = vld [vmem:[#allocation5 + $0x24] sm:$0xf]
    %v131 = vld [vmem:[#allocation5 + $0x28] sm:$0xf]
    %v132 = vld [vmem:[#allocation5 + $0x2c] sm:$0xf]
    %v133 = vld [vmem:[#allocation5 + $0x30] sm:$0xf]
    %v134 = vld [vmem:[#allocation5 + $0x34] sm:$0xf]
    %v135 = vld [vmem:[#allocation5 + $0x38] sm:$0xf]
    %v136 = vld [vmem:[#allocation5 + $0x3c] sm:$0xf]
    %v201 = vunpack.c.l.b16 %v57
    %v202 = vunpack.c.l.b16 %v58
    %v203 = vunpack.c.l.b16 %v59
    %v204 = vunpack.c.l.b16 %v60
    %v205 = vunpack.c.l.b16 %v61
    %v206 = vunpack.c.l.b16 %v62
    %v207 = vunpack.c.l.b16 %v63
    %v208 = vunpack.c.l.b16 %v64
    %v209 = vunpack.c.l.b16 %v65
    %v210 = vunpack.c.l.b16 %v66
    %v211 = vunpack.c.l.b16 %v67
    %v212 = vunpack.c.l.b16 %v68
    %v213 = vunpack.c.l.b16 %v69
    %v214 = vunpack.c.l.b16 %v70
    %v215 = vunpack.c.l.b16 %v71
    %v216 = vunpack.c.l.b16 %v72
    %v217 = vunpack.c.l.b16 %v73
    %v218 = vunpack.c.l.b16 %v74
    %v219 = vunpack.c.l.b16 %v75
    %v220 = vunpack.c.l.b16 %v76
    %v221 = vunpack.c.l.b16 %v77
    %v222 = vunpack.c.l.b16 %v78
    %v223 = vunpack.c.l.b16 %v79
    %v224 = vunpack.c.l.b16 %v80
    %v225 = vunpack.c.l.b16 %v81
    %v226 = vunpack.c.l.b16 %v82
    %v227 = vunpack.c.l.b16 %v83
    %v228 = vunpack.c.l.b16 %v84
    %v229 = vunpack.c.l.b16 %v85
    %v230 = vunpack.c.l.b16 %v86
    %v231 = vunpack.c.l.b16 %v87
    %v232 = vunpack.c.l.b16 %v88
    %v233 = vunpack.c.l.b16 %v89
    %v234 = vunpack.c.l.b16 %v90
    %v235 = vunpack.c.l.b16 %v91
    %v236 = vunpack.c.l.b16 %v92
    %v237 = vunpack.c.l.b16 %v93
    %v238 = vunpack.c.l.b16 %v94
    %v239 = vunpack.c.l.b16 %v95
    %v240 = vunpack.c.l.b16 %v96
    %v241 = vunpack.c.l.b16 %v97
    %v242 = vunpack.c.l.b16 %v98
    %v243 = vunpack.c.l.b16 %v99
    %v244 = vunpack.c.l.b16 %v100
    %v245 = vunpack.c.l.b16 %v101
    %v246 = vunpack.c.l.b16 %v102
    %v247 = vunpack.c.l.b16 %v103
    %v248 = vunpack.c.l.b16 %v104
    %v249 = vunpack.c.l.b16 %v105
    %v250 = vunpack.c.l.b16 %v106
    %v251 = vunpack.c.l.b16 %v107
    %v252 = vunpack.c.l.b16 %v108
    %v253 = vunpack.c.l.b16 %v109
    %v254 = vunpack.c.l.b16 %v110
    %v255 = vunpack.c.l.b16 %v111
    %v256 = vunpack.c.l.b16 %v112
    %v257 = vunpack.c.l.b16 %v113
    %v258 = vunpack.c.l.b16 %v114
    %v259 = vunpack.c.l.b16 %v115
    %v260 = vunpack.c.l.b16 %v116
    %v261 = vunpack.c.l.b16 %v117
    %v262 = vunpack.c.l.b16 %v118
    %v263 = vunpack.c.l.b16 %v119
    %v264 = vunpack.c.l.b16 %v120
    %v265 = vpack.c.b16 %v202, %v201
    %v266 = vpack.c.b16 %v204, %v203
    %v267 = vpack.c.b16 %v206, %v205
    %v268 = vpack.c.b16 %v208, %v207
    %v269 = vpack.c.b16 %v210, %v209
    %v270 = vpack.c.b16 %v212, %v211
    %v271 = vpack.c.b16 %v214, %v213
    %v272 = vpack.c.b16 %v216, %v215
    %v273 = vpack.c.b16 %v218, %v217
    %v274 = vpack.c.b16 %v220, %v219
    %v275 = vpack.c.b16 %v222, %v221
    %v276 = vpack.c.b16 %v224, %v223
    %v277 = vpack.c.b16 %v226, %v225
    %v278 = vpack.c.b16 %v228, %v227
    %v279 = vpack.c.b16 %v230, %v229
    %v280 = vpack.c.b16 %v232, %v231
    %v281 = vpack.c.b16 %v234, %v233
    %v282 = vpack.c.b16 %v236, %v235
    %v283 = vpack.c.b16 %v238, %v237
    %v284 = vpack.c.b16 %v240, %v239
    %v285 = vpack.c.b16 %v242, %v241
    %v286 = vpack.c.b16 %v244, %v243
    %v287 = vpack.c.b16 %v246, %v245
    %v288 = vpack.c.b16 %v248, %v247
    %v289 = vpack.c.b16 %v250, %v249
    %v290 = vpack.c.b16 %v252, %v251
    %v291 = vpack.c.b16 %v254, %v253
    %v292 = vpack.c.b16 %v256, %v255
    %v293 = vpack.c.b16 %v258, %v257
    %v294 = vpack.c.b16 %v260, %v259
    %v295 = vpack.c.b16 %v262, %v261
    %v296 = vpack.c.b16 %v264, %v263
    %v345 = vunpack.c.l.b16 %v121
    %v346 = vunpack.c.l.b16 %v122
    %v347 = vunpack.c.l.b16 %v123
    %v348 = vunpack.c.l.b16 %v124
    %v349 = vunpack.c.l.b16 %v125
    %v350 = vunpack.c.l.b16 %v126
    %v351 = vunpack.c.l.b16 %v127
    %v352 = vunpack.c.l.b16 %v128
    %v353 = vunpack.c.l.b16 %v129
    %v354 = vunpack.c.l.b16 %v130
    %v355 = vunpack.c.l.b16 %v131
    %v356 = vunpack.c.l.b16 %v132
    %v357 = vunpack.c.l.b16 %v133
    %v358 = vunpack.c.l.b16 %v134
    %v359 = vunpack.c.l.b16 %v135
    %v360 = vunpack.c.l.b16 %v136
    %v361 = vpack.c.b16 %v346, %v345
    %v362 = vpack.c.b16 %v348, %v347
    %v363 = vpack.c.b16 %v350, %v349
    %v364 = vpack.c.b16 %v352, %v351
    %v365 = vpack.c.b16 %v354, %v353
    %v366 = vpack.c.b16 %v356, %v355
    %v367 = vpack.c.b16 %v358, %v357
    %v368 = vpack.c.b16 %v360, %v359
    %377 = vmatprep.subr.bf16.mxu0 0
    %378 = vmatpush1.bf16.msra.mxu0 %v368
    %379 = vmatprep.subr.bf16.mxu0 0
    %380 = vmatpush1.bf16.msra.mxu0 %v367
    %381 = vmatprep.subr.bf16.mxu0 0
    %382 = vmatpush1.bf16.msra.mxu0 %v366
    %383 = vmatprep.subr.bf16.mxu0 0
    %384 = vmatpush1.bf16.msra.mxu0 %v365
    %385 = vmatprep.subr.bf16.mxu0 0
    %386 = vmatpush1.bf16.msra.mxu0 %v364
    %387 = vmatprep.subr.bf16.mxu0 0
    %388 = vmatpush1.bf16.msra.mxu0 %v363
    %389 = vmatprep.subr.bf16.mxu0 0
    %390 = vmatpush1.bf16.msra.mxu0 %v362
    %391 = vmatprep.subr.bf16.mxu0 0
    %392 = vmatpush1.bf16.msra.mxu0 %v361
    %393 = vmatprep.subr.bf16.mxu0 0
    %394 = vmatpush2.bf16.msra.mxu0 0
    %395 = vmatprep.subr.bf16.mxu0 0
    %396 = vmatpush2.bf16.msra.mxu0 0
    %397 = vmatprep.subr.bf16.mxu0 0
    %398 = vmatpush2.bf16.msra.mxu0 0
    %399 = vmatprep.subr.bf16.mxu0 0
    %400 = vmatpush2.bf16.msra.mxu0 0
    %401 = vmatprep.subr.bf16.mxu0 0
    %402 = vmatpush2.bf16.msra.mxu0 0
    %403 = vmatprep.subr.bf16.mxu0 0
    %404 = vmatpush2.bf16.msra.mxu0 0
    %405 = vmatprep.subr.bf16.mxu0 0
    %406 = vmatpush2.bf16.msra.mxu0 0
    %407 = vmatprep.subr.bf16.mxu0 0
    %408 = vmatpush2.bf16.msra.mxu0 0
    %409 = vmatprep.mubr.bf16.mxu0 0
    %410 = vmatmul.mubr.bf16.gmra.mxu0 %v265
    %v411 = vpop.f32.mrf.mxu0
    %v412 = vadd.f32 0.0, %v411
    %v413 = vpop.f32.mrf.mxu0
    %v414 = vpop.f32.mrf.mxu0
    %v415 = vadd.f32 0.0, %v414
    %v416 = vpop.f32.mrf.mxu0
    %417 = vmatprep.mubr.bf16.mxu0 0
    %418 = vmatmul.mubr.bf16.gmra.mxu0 %v266
    %v419 = vpop.f32.mrf.mxu0
    %v420 = vadd.f32 0.0, %v419
    %v421 = vpop.f32.mrf.mxu0
    %v422 = vpop.f32.mrf.mxu0
    %v423 = vadd.f32 0.0, %v422
    %v424 = vpop.f32.mrf.mxu0
    %425 = vmatprep.mubr.bf16.mxu0 0
    %426 = vmatmul.mubr.bf16.gmra.mxu0 %v267
    %v427 = vpop.f32.mrf.mxu0
    %v428 = vadd.f32 0.0, %v427
    %v429 = vpop.f32.mrf.mxu0
    %v430 = vpop.f32.mrf.mxu0
    %v431 = vadd.f32 0.0, %v430
    %v432 = vpop.f32.mrf.mxu0
    %433 = vmatprep.mubr.bf16.mxu0 0
    %434 = vmatmul.mubr.bf16.gmra.mxu0 %v268
    %v435 = vpop.f32.mrf.mxu0
    %v436 = vadd.f32 0.0, %v435
    %v437 = vpop.f32.mrf.mxu0
    %v438 = vpop.f32.mrf.mxu0
    %v439 = vadd.f32 0.0, %v438
    %v440 = vpop.f32.mrf.mxu0
    %441 = vmatprep.mubr.bf16.mxu0 0
    %442 = vmatmul.mubr.bf16.gmra.mxu0 %v269
    %v443 = vpop.f32.mrf.mxu0
    %v444 = vadd.f32 0.0, %v443
    %v445 = vpop.f32.mrf.mxu0
    %v446 = vpop.f32.mrf.mxu0
    %v447 = vadd.f32 0.0, %v446
    %v448 = vpop.f32.mrf.mxu0
    %449 = vmatprep.mubr.bf16.mxu0 0
    %450 = vmatmul.mubr.bf16.gmra.mxu0 %v270
    %v451 = vpop.f32.mrf.mxu0
    %v452 = vadd.f32 0.0, %v451
    %v453 = vpop.f32.mrf.mxu0
    %v454 = vpop.f32.mrf.mxu0
    %v455 = vadd.f32 0.0, %v454
    %v456 = vpop.f32.mrf.mxu0
    %457 = vmatprep.mubr.bf16.mxu0 0
    %458 = vmatmul.mubr.bf16.gmra.mxu0 %v271
    %v459 = vpop.f32.mrf.mxu0
    %v460 = vadd.f32 0.0, %v459
    %v461 = vpop.f32.mrf.mxu0
    %v462 = vpop.f32.mrf.mxu0
    %v463 = vadd.f32 0.0, %v462
    %v464 = vpop.f32.mrf.mxu0
    %465 = vmatprep.mubr.bf16.mxu0 0
    %466 = vmatmul.mubr.bf16.gmra.mxu0 %v272
    %v467 = vpop.f32.mrf.mxu0
    %v468 = vadd.f32 0.0, %v467
    %v469 = vpop.f32.mrf.mxu0
    %v470 = vpop.f32.mrf.mxu0
    %v471 = vadd.f32 0.0, %v470
    %v472 = vpop.f32.mrf.mxu0
    %473 = vmatprep.mubr.bf16.mxu0 0
    %474 = vmatmul.mubr.bf16.gmra.mxu0 %v273
    %v475 = vpop.f32.mrf.mxu0
    %v476 = vadd.f32 0.0, %v475
    %v477 = vpop.f32.mrf.mxu0
    %v478 = vpop.f32.mrf.mxu0
    %v479 = vadd.f32 0.0, %v478
    %v480 = vpop.f32.mrf.mxu0
    %481 = vmatprep.mubr.bf16.mxu0 0
    %482 = vmatmul.mubr.bf16.gmra.mxu0 %v274
    %v483 = vpop.f32.mrf.mxu0
    %v484 = vadd.f32 0.0, %v483
    %v485 = vpop.f32.mrf.mxu0
    %v486 = vpop.f32.mrf.mxu0
    %v487 = vadd.f32 0.0, %v486
    %v488 = vpop.f32.mrf.mxu0
    %489 = vmatprep.mubr.bf16.mxu0 0
    %490 = vmatmul.mubr.bf16.gmra.mxu0 %v275
    %v491 = vpop.f32.mrf.mxu0
    %v492 = vadd.f32 0.0, %v491
    %v493 = vpop.f32.mrf.mxu0
    %v494 = vpop.f32.mrf.mxu0
    %v495 = vadd.f32 0.0, %v494
    %v496 = vpop.f32.mrf.mxu0
    %497 = vmatprep.mubr.bf16.mxu0 0
    %498 = vmatmul.mubr.bf16.gmra.mxu0 %v276
    %v499 = vpop.f32.mrf.mxu0
    %v500 = vadd.f32 0.0, %v499
    %v501 = vpop.f32.mrf.mxu0
    %v502 = vpop.f32.mrf.mxu0
    %v503 = vadd.f32 0.0, %v502
    %v504 = vpop.f32.mrf.mxu0
    %505 = vmatprep.mubr.bf16.mxu0 0
    %506 = vmatmul.mubr.bf16.gmra.mxu0 %v277
    %v507 = vpop.f32.mrf.mxu0
    %v508 = vadd.f32 0.0, %v507
    %v509 = vpop.f32.mrf.mxu0
    %v510 = vpop.f32.mrf.mxu0
    %v511 = vadd.f32 0.0, %v510
    %v512 = vpop.f32.mrf.mxu0
    %513 = vmatprep.mubr.bf16.mxu0 0
    %514 = vmatmul.mubr.bf16.gmra.mxu0 %v278
    %v515 = vpop.f32.mrf.mxu0
    %v516 = vadd.f32 0.0, %v515
    %v517 = vpop.f32.mrf.mxu0
    %v518 = vpop.f32.mrf.mxu0
    %v519 = vadd.f32 0.0, %v518
    %v520 = vpop.f32.mrf.mxu0
    %521 = vmatprep.mubr.bf16.mxu0 0
    %522 = vmatmul.mubr.bf16.gmra.mxu0 %v279
    %v523 = vpop.f32.mrf.mxu0
    %v524 = vadd.f32 0.0, %v523
    %v525 = vpop.f32.mrf.mxu0
    %v526 = vpop.f32.mrf.mxu0
    %v527 = vadd.f32 0.0, %v526
    %v528 = vpop.f32.mrf.mxu0
    %529 = vmatprep.mubr.bf16.mxu0 0
    %530 = vmatmul.mubr.bf16.gmra.mxu0 %v280
    %v531 = vpop.f32.mrf.mxu0
    %v532 = vadd.f32 0.0, %v531
    %v533 = vpop.f32.mrf.mxu0
    %v534 = vpop.f32.mrf.mxu0
    %v535 = vadd.f32 0.0, %v534
    %v536 = vpop.f32.mrf.mxu0
    %537 = vmatprep.mubr.bf16.mxu0 0
    %538 = vmatmul.mubr.bf16.gmra.mxu0 %v281
    %v539 = vpop.f32.mrf.mxu0
    %v540 = vadd.f32 0.0, %v539
    %v541 = vpop.f32.mrf.mxu0
    %v542 = vpop.f32.mrf.mxu0
    %v543 = vadd.f32 0.0, %v542
    %v544 = vpop.f32.mrf.mxu0
    %545 = vmatprep.mubr.bf16.mxu0 0
    %546 = vmatmul.mubr.bf16.gmra.mxu0 %v282
    %v547 = vpop.f32.mrf.mxu0
    %v548 = vadd.f32 0.0, %v547
    %v549 = vpop.f32.mrf.mxu0
    %v550 = vpop.f32.mrf.mxu0
    %v551 = vadd.f32 0.0, %v550
    %v552 = vpop.f32.mrf.mxu0
    %553 = vmatprep.mubr.bf16.mxu0 0
    %554 = vmatmul.mubr.bf16.gmra.mxu0 %v283
    %v555 = vpop.f32.mrf.mxu0
    %v556 = vadd.f32 0.0, %v555
    %v557 = vpop.f32.mrf.mxu0
    %v558 = vpop.f32.mrf.mxu0
    %v559 = vadd.f32 0.0, %v558
    %v560 = vpop.f32.mrf.mxu0
    %561 = vmatprep.mubr.bf16.mxu0 0
    %562 = vmatmul.mubr.bf16.gmra.mxu0 %v284
    %v563 = vpop.f32.mrf.mxu0
    %v564 = vadd.f32 0.0, %v563
    %v565 = vpop.f32.mrf.mxu0
    %v566 = vpop.f32.mrf.mxu0
    %v567 = vadd.f32 0.0, %v566
    %v568 = vpop.f32.mrf.mxu0
    %569 = vmatprep.mubr.bf16.mxu0 0
    %570 = vmatmul.mubr.bf16.gmra.mxu0 %v285
    %v571 = vpop.f32.mrf.mxu0
    %v572 = vadd.f32 0.0, %v571
    %v573 = vpop.f32.mrf.mxu0
    %v574 = vpop.f32.mrf.mxu0
    %v575 = vadd.f32 0.0, %v574
    %v576 = vpop.f32.mrf.mxu0
    %577 = vmatprep.mubr.bf16.mxu0 0
    %578 = vmatmul.mubr.bf16.gmra.mxu0 %v286
    %v579 = vpop.f32.mrf.mxu0
    %v580 = vadd.f32 0.0, %v579
    %v581 = vpop.f32.mrf.mxu0
    %v582 = vpop.f32.mrf.mxu0
    %v583 = vadd.f32 0.0, %v582
    %v584 = vpop.f32.mrf.mxu0
    %585 = vmatprep.mubr.bf16.mxu0 0
    %586 = vmatmul.mubr.bf16.gmra.mxu0 %v287
    %v587 = vpop.f32.mrf.mxu0
    %v588 = vadd.f32 0.0, %v587
    %v589 = vpop.f32.mrf.mxu0
    %v590 = vpop.f32.mrf.mxu0
    %v591 = vadd.f32 0.0, %v590
    %v592 = vpop.f32.mrf.mxu0
    %593 = vmatprep.mubr.bf16.mxu0 0
    %594 = vmatmul.mubr.bf16.gmra.mxu0 %v288
    %v595 = vpop.f32.mrf.mxu0
    %v596 = vadd.f32 0.0, %v595
    %v597 = vpop.f32.mrf.mxu0
    %v598 = vpop.f32.mrf.mxu0
    %v599 = vadd.f32 0.0, %v598
    %v600 = vpop.f32.mrf.mxu0
    %601 = vmatprep.mubr.bf16.mxu0 0
    %602 = vmatmul.mubr.bf16.gmra.mxu0 %v289
    %v603 = vpop.f32.mrf.mxu0
    %v604 = vadd.f32 0.0, %v603
    %v605 = vpop.f32.mrf.mxu0
    %v606 = vpop.f32.mrf.mxu0
    %v607 = vadd.f32 0.0, %v606
    %v608 = vpop.f32.mrf.mxu0
    %609 = vmatprep.mubr.bf16.mxu0 0
    %610 = vmatmul.mubr.bf16.gmra.mxu0 %v290
    %v611 = vpop.f32.mrf.mxu0
    %v612 = vadd.f32 0.0, %v611
    %v613 = vpop.f32.mrf.mxu0
    %v614 = vpop.f32.mrf.mxu0
    %v615 = vadd.f32 0.0, %v614
    %v616 = vpop.f32.mrf.mxu0
    %617 = vmatprep.mubr.bf16.mxu0 0
    %618 = vmatmul.mubr.bf16.gmra.mxu0 %v291
    %v619 = vpop.f32.mrf.mxu0
    %v620 = vadd.f32 0.0, %v619
    %v621 = vpop.f32.mrf.mxu0
    %v622 = vpop.f32.mrf.mxu0
    %v623 = vadd.f32 0.0, %v622
    %v624 = vpop.f32.mrf.mxu0
    %625 = vmatprep.mubr.bf16.mxu0 0
    %626 = vmatmul.mubr.bf16.gmra.mxu0 %v292
    %v627 = vpop.f32.mrf.mxu0
    %v628 = vadd.f32 0.0, %v627
    %v629 = vpop.f32.mrf.mxu0
    %v630 = vpop.f32.mrf.mxu0
    %v631 = vadd.f32 0.0, %v630
    %v632 = vpop.f32.mrf.mxu0
    %633 = vmatprep.mubr.bf16.mxu0 0
    %634 = vmatmul.mubr.bf16.gmra.mxu0 %v293
    %v635 = vpop.f32.mrf.mxu0
    %v636 = vadd.f32 0.0, %v635
    %v637 = vpop.f32.mrf.mxu0
    %v638 = vpop.f32.mrf.mxu0
    %v639 = vadd.f32 0.0, %v638
    %v640 = vpop.f32.mrf.mxu0
    %641 = vmatprep.mubr.bf16.mxu0 0
    %642 = vmatmul.mubr.bf16.gmra.mxu0 %v294
    %v643 = vpop.f32.mrf.mxu0
    %v644 = vadd.f32 0.0, %v643
    %v645 = vpop.f32.mrf.mxu0
    %v646 = vpop.f32.mrf.mxu0
    %v647 = vadd.f32 0.0, %v646
    %v648 = vpop.f32.mrf.mxu0
    %649 = vmatprep.mubr.bf16.mxu0 0
    %650 = vmatmul.mubr.bf16.gmra.mxu0 %v295
    %v651 = vpop.f32.mrf.mxu0
    %v652 = vadd.f32 0.0, %v651
    %v653 = vpop.f32.mrf.mxu0
    %v654 = vpop.f32.mrf.mxu0
    %v655 = vadd.f32 0.0, %v654
    %v656 = vpop.f32.mrf.mxu0
    %657 = vmatprep.mubr.bf16.mxu0 0
    %658 = vmatmul.mubr.bf16.gmra.mxu0 %v296
    %v659 = vpop.f32.mrf.mxu0
    %v660 = vadd.f32 0.0, %v659
    %v661 = vpop.f32.mrf.mxu0
    %v662 = vpop.f32.mrf.mxu0
    %v663 = vadd.f32 0.0, %v662
    %v664 = vpop.f32.mrf.mxu0
    %665 = vdwg.mxu0
    %666 = vst [vmem:[#allocation7] sm:$0xff] %v412
    %667 = vst [vmem:[#allocation7 + $0x8] sm:$0xff] %v415
    %668 = vst [vmem:[#allocation7 + $0x10] sm:$0xff] %v420
    %669 = vst [vmem:[#allocation7 + $0x18] sm:$0xff] %v423
    %670 = vst [vmem:[#allocation7 + $0x20] sm:$0xff] %v428
    %671 = vst [vmem:[#allocation7 + $0x28] sm:$0xff] %v431
    %672 = vst [vmem:[#allocation7 + $0x30] sm:$0xff] %v436
    %673 = vst [vmem:[#allocation7 + $0x38] sm:$0xff] %v439
    %674 = vst [vmem:[#allocation7 + $0x40] sm:$0xff] %v444
    %675 = vst [vmem:[#allocation7 + $0x48] sm:$0xff] %v447
    %676 = vst [vmem:[#allocation7 + $0x50] sm:$0xff] %v452
    %677 = vst [vmem:[#allocation7 + $0x58] sm:$0xff] %v455
    %678 = vst [vmem:[#allocation7 + $0x60] sm:$0xff] %v460
    %679 = vst [vmem:[#allocation7 + $0x68] sm:$0xff] %v463
    %680 = vst [vmem:[#allocation7 + $0x70] sm:$0xff] %v468
    %681 = vst [vmem:[#allocation7 + $0x78] sm:$0xff] %v471
    %682 = vst [vmem:[#allocation7 + $0x80] sm:$0xff] %v476
    %683 = vst [vmem:[#allocation7 + $0x88] sm:$0xff] %v479
    %684 = vst [vmem:[#allocation7 + $0x90] sm:$0xff] %v484
    %685 = vst [vmem:[#allocation7 + $0x98] sm:$0xff] %v487
    %686 = vst [vmem:[#allocation7 + $0xa0] sm:$0xff] %v492
    %687 = vst [vmem:[#allocation7 + $0xa8] sm:$0xff] %v495
    %688 = vst [vmem:[#allocation7 + $0xb0] sm:$0xff] %v500
    %689 = vst [vmem:[#allocation7 + $0xb8] sm:$0xff] %v503
    %690 = vst [vmem:[#allocation7 + $0xc0] sm:$0xff] %v508
    %691 = vst [vmem:[#allocation7 + $0xc8] sm:$0xff] %v511
    %692 = vst [vmem:[#allocation7 + $0xd0] sm:$0xff] %v516
    %693 = vst [vmem:[#allocation7 + $0xd8] sm:$0xff] %v519
    %694 = vst [vmem:[#allocation7 + $0xe0] sm:$0xff] %v524
    %695 = vst [vmem:[#allocation7 + $0xe8] sm:$0xff] %v527
    %696 = vst [vmem:[#allocation7 + $0xf0] sm:$0xff] %v532
    %697 = vst [vmem:[#allocation7 + $0xf8] sm:$0xff] %v535
    %698 = vst [vmem:[#allocation7 + $0x100] sm:$0xff] %v540
    %699 = vst [vmem:[#allocation7 + $0x108] sm:$0xff] %v543
    %700 = vst [vmem:[#allocation7 + $0x110] sm:$0xff] %v548
    %701 = vst [vmem:[#allocation7 + $0x118] sm:$0xff] %v551
    %702 = vst [vmem:[#allocation7 + $0x120] sm:$0xff] %v556
    %703 = vst [vmem:[#allocation7 + $0x128] sm:$0xff] %v559
    %704 = vst [vmem:[#allocation7 + $0x130] sm:$0xff] %v564
    %705 = vst [vmem:[#allocation7 + $0x138] sm:$0xff] %v567
    %706 = vst [vmem:[#allocation7 + $0x140] sm:$0xff] %v572
    %707 = vst [vmem:[#allocation7 + $0x148] sm:$0xff] %v575
    %708 = vst [vmem:[#allocation7 + $0x150] sm:$0xff] %v580
    %709 = vst [vmem:[#allocation7 + $0x158] sm:$0xff] %v583
    %710 = vst [vmem:[#allocation7 + $0x160] sm:$0xff] %v588
    %711 = vst [vmem:[#allocation7 + $0x168] sm:$0xff] %v591
    %712 = vst [vmem:[#allocation7 + $0x170] sm:$0xff] %v596
    %713 = vst [vmem:[#allocation7 + $0x178] sm:$0xff] %v599
    %714 = vst [vmem:[#allocation7 + $0x180] sm:$0xff] %v604
    %715 = vst [vmem:[#allocation7 + $0x188] sm:$0xff] %v607
    %716 = vst [vmem:[#allocation7 + $0x190] sm:$0xff] %v612
    %717 = vst [vmem:[#allocation7 + $0x198] sm:$0xff] %v615
    %718 = vst [vmem:[#allocation7 + $0x1a0] sm:$0xff] %v620
    %719 = vst [vmem:[#allocation7 + $0x1a8] sm:$0xff] %v623
    %720 = vst [vmem:[#allocation7 + $0x1b0] sm:$0xff] %v628
    %721 = vst [vmem:[#allocation7 + $0x1b8] sm:$0xff] %v631
    %722 = vst [vmem:[#allocation7 + $0x1c0] sm:$0xff] %v636
    %723 = vst [vmem:[#allocation7 + $0x1c8] sm:$0xff] %v639
    %724 = vst [vmem:[#allocation7 + $0x1d0] sm:$0xff] %v644
    %725 = vst [vmem:[#allocation7 + $0x1d8] sm:$0xff] %v647
    %726 = vst [vmem:[#allocation7 + $0x1e0] sm:$0xff] %v652
    %727 = vst [vmem:[#allocation7 + $0x1e8] sm:$0xff] %v655
    %728 = vst [vmem:[#allocation7 + $0x1f0] sm:$0xff] %v660
    %729 = vst [vmem:[#allocation7 + $0x1f8] sm:$0xff] %v663
    %v730 = vld [vmem:[#allocation8] sm:$0x1]
    %v731 = vadd.f32 %v412, %v415
    %v732 = vadd.f32 %v731, %v420
    %v733 = vadd.f32 %v732, %v423
    %v734 = vadd.f32 %v733, %v428
    %v735 = vadd.f32 %v734, %v431
    %v736 = vadd.f32 %v735, %v436
    %v737 = vadd.f32 %v736, %v439
    %v738 = vadd.f32 %v737, %v444
    %v739 = vadd.f32 %v738, %v447
    %v740 = vadd.f32 %v739, %v452
    %v741 = vadd.f32 %v740, %v455
    %v742 = vadd.f32 %v741, %v460
    %v743 = vadd.f32 %v742, %v463
    %v744 = vadd.f32 %v743, %v468
    %v745 = vadd.f32 %v744, %v471
    %v746 = vadd.f32 %v745, %v476
    %v747 = vadd.f32 %v746, %v479
    %v748 = vadd.f32 %v747, %v484
    %v749 = vadd.f32 %v748, %v487
    %v750 = vadd.f32 %v749, %v492
    %v751 = vadd.f32 %v750, %v495
    %v752 = vadd.f32 %v751, %v500
    %v753 = vadd.f32 %v752, %v503
    %v754 = vadd.f32 %v753, %v508
    %v755 = vadd.f32 %v754, %v511
    %v756 = vadd.f32 %v755, %v516
    %v757 = vadd.f32 %v756, %v519
    %v758 = vadd.f32 %v757, %v524
    %v759 = vadd.f32 %v758, %v527
    %v760 = vadd.f32 %v759, %v532
    %v761 = vadd.f32 %v760, %v535
    %v762 = vadd.f32 %v761, %v540
    %v763 = vadd.f32 %v762, %v543
    %v764 = vadd.f32 %v763, %v548
    %v765 = vadd.f32 %v764, %v551
    %v766 = vadd.f32 %v765, %v556
    %v767 = vadd.f32 %v766, %v559
    %v768 = vadd.f32 %v767, %v564
    %v769 = vadd.f32 %v768, %v567
    %v770 = vadd.f32 %v769, %v572
    %v771 = vadd.f32 %v770, %v575
    %v772 = vadd.f32 %v771, %v580
    %v773 = vadd.f32 %v772, %v583
    %v774 = vadd.f32 %v773, %v588
    %v775 = vadd.f32 %v774, %v591
    %v776 = vadd.f32 %v775, %v596
    %v777 = vadd.f32 %v776, %v599
    %v778 = vadd.f32 %v777, %v604
    %v779 = vadd.f32 %v778, %v607
    %v780 = vadd.f32 %v779, %v612
    %v781 = vadd.f32 %v780, %v615
    %v782 = vadd.f32 %v781, %v620
    %v783 = vadd.f32 %v782, %v623
    %v784 = vadd.f32 %v783, %v628
    %v785 = vadd.f32 %v784, %v631
    %v786 = vadd.f32 %v785, %v636
    %v787 = vadd.f32 %v786, %v639
    %v788 = vadd.f32 %v787, %v644
    %v789 = vadd.f32 %v788, %v647
    %v790 = vadd.f32 %v789, %v652
    %v791 = vadd.f32 %v790, %v655
    %v792 = vadd.f32 %v791, %v660
    %v793 = vadd.f32 %v792, %v663
    %v794 = vrot.slane %v793, 4
    %v795 = vadd.f32 %v793, %v794
    %v796 = vrot.slane %v795, 2
    %v797 = vadd.f32 %v795, %v796
    %v798 = vrot.slane %v797, 1
    %v799 = vadd.f32 %v797, %v798
    %v800 = vadd.f32 %v730, %v799
    %801 = vst [vmem:[#allocation8] sm:$0x1] %v800
    %v802 = vld [vmem:[#allocation8 + $0x1] sm:$0x1]
    %v803 = vmul.f32 %v412, %v412
    %v804 = vmul.f32 %v415, %v415
    %v805 = vmul.f32 %v420, %v420
    %v806 = vmul.f32 %v423, %v423
    %v807 = vmul.f32 %v428, %v428
    %v808 = vmul.f32 %v431, %v431
    %v809 = vmul.f32 %v436, %v436
    %v810 = vmul.f32 %v439, %v439
    %v811 = vmul.f32 %v444, %v444
    %v812 = vmul.f32 %v447, %v447
    %v813 = vmul.f32 %v452, %v452
    %v814 = vmul.f32 %v455, %v455
    %v815 = vmul.f32 %v460, %v460
    %v816 = vmul.f32 %v463, %v463
    %v817 = vmul.f32 %v468, %v468
    %v818 = vmul.f32 %v471, %v471
    %v819 = vmul.f32 %v476, %v476
    %v820 = vmul.f32 %v479, %v479
    %v821 = vmul.f32 %v484, %v484
    %v822 = vmul.f32 %v487, %v487
    %v823 = vmul.f32 %v492, %v492
    %v824 = vmul.f32 %v495, %v495
    %v825 = vmul.f32 %v500, %v500
    %v826 = vmul.f32 %v503, %v503
    %v827 = vmul.f32 %v508, %v508
    %v828 = vmul.f32 %v511, %v511
    %v829 = vmul.f32 %v516, %v516
    %v830 = vmul.f32 %v519, %v519
    %v831 = vmul.f32 %v524, %v524
    %v832 = vmul.f32 %v527, %v527
    %v833 = vmul.f32 %v532, %v532
    %v834 = vmul.f32 %v535, %v535
    %v835 = vmul.f32 %v540, %v540
    %v836 = vmul.f32 %v543, %v543
    %v837 = vmul.f32 %v548, %v548
    %v838 = vmul.f32 %v551, %v551
    %v839 = vmul.f32 %v556, %v556
    %v840 = vmul.f32 %v559, %v559
    %v841 = vmul.f32 %v564, %v564
    %v842 = vmul.f32 %v567, %v567
    %v843 = vmul.f32 %v572, %v572
    %v844 = vmul.f32 %v575, %v575
    %v845 = vmul.f32 %v580, %v580
    %v846 = vmul.f32 %v583, %v583
    %v847 = vmul.f32 %v588, %v588
    %v848 = vmul.f32 %v591, %v591
    %v849 = vmul.f32 %v596, %v596
    %v850 = vmul.f32 %v599, %v599
    %v851 = vmul.f32 %v604, %v604
    %v852 = vmul.f32 %v607, %v607
    %v853 = vmul.f32 %v612, %v612
    %v854 = vmul.f32 %v615, %v615
    %v855 = vmul.f32 %v620, %v620
    %v856 = vmul.f32 %v623, %v623
    %v857 = vmul.f32 %v628, %v628
    %v858 = vmul.f32 %v631, %v631
    %v859 = vmul.f32 %v636, %v636
    %v860 = vmul.f32 %v639, %v639
    %v861 = vmul.f32 %v644, %v644
    %v862 = vmul.f32 %v647, %v647
    %v863 = vmul.f32 %v652, %v652
    %v864 = vmul.f32 %v655, %v655
    %v865 = vmul.f32 %v660, %v660
    %v866 = vmul.f32 %v663, %v663
    %v867 = vadd.f32 %v803, %v804
    %v868 = vadd.f32 %v867, %v805
    %v869 = vadd.f32 %v868, %v806
    %v870 = vadd.f32 %v869, %v807
    %v871 = vadd.f32 %v870, %v808
    %v872 = vadd.f32 %v871, %v809
    %v873 = vadd.f32 %v872, %v810
    %v874 = vadd.f32 %v873, %v811
    %v875 = vadd.f32 %v874, %v812
    %v876 = vadd.f32 %v875, %v813
    %v877 = vadd.f32 %v876, %v814
    %v878 = vadd.f32 %v877, %v815
    %v879 = vadd.f32 %v878, %v816
    %v880 = vadd.f32 %v879, %v817
    %v881 = vadd.f32 %v880, %v818
    %v882 = vadd.f32 %v881, %v819
    %v883 = vadd.f32 %v882, %v820
    %v884 = vadd.f32 %v883, %v821
    %v885 = vadd.f32 %v884, %v822
    %v886 = vadd.f32 %v885, %v823
    %v887 = vadd.f32 %v886, %v824
    %v888 = vadd.f32 %v887, %v825
    %v889 = vadd.f32 %v888, %v826
    %v890 = vadd.f32 %v889, %v827
    %v891 = vadd.f32 %v890, %v828
    %v892 = vadd.f32 %v891, %v829
    %v893 = vadd.f32 %v892, %v830
    %v894 = vadd.f32 %v893, %v831
    %v895 = vadd.f32 %v894, %v832
    %v896 = vadd.f32 %v895, %v833
    %v897 = vadd.f32 %v896, %v834
    %v898 = vadd.f32 %v897, %v835
    %v899 = vadd.f32 %v898, %v836
    %v900 = vadd.f32 %v899, %v837
    %v901 = vadd.f32 %v900, %v838
    %v902 = vadd.f32 %v901, %v839
    %v903 = vadd.f32 %v902, %v840
    %v904 = vadd.f32 %v903, %v841
    %v905 = vadd.f32 %v904, %v842
    %v906 = vadd.f32 %v905, %v843
    %v907 = vadd.f32 %v906, %v844
    %v908 = vadd.f32 %v907, %v845
    %v909 = vadd.f32 %v908, %v846
    %v910 = vadd.f32 %v909, %v847
    %v911 = vadd.f32 %v910, %v848
    %v912 = vadd.f32 %v911, %v849
    %v913 = vadd.f32 %v912, %v850
    %v914 = vadd.f32 %v913, %v851
    %v915 = vadd.f32 %v914, %v852
    %v916 = vadd.f32 %v915, %v853
    %v917 = vadd.f32 %v916, %v854
    %v918 = vadd.f32 %v917, %v855
    %v919 = vadd.f32 %v918, %v856
    %v920 = vadd.f32 %v919, %v857
    %v921 = vadd.f32 %v920, %v858
    %v922 = vadd.f32 %v921, %v859
    %v923 = vadd.f32 %v922, %v860
    %v924 = vadd.f32 %v923, %v861
    %v925 = vadd.f32 %v924, %v862
    %v926 = vadd.f32 %v925, %v863
    %v927 = vadd.f32 %v926, %v864
    %v928 = vadd.f32 %v927, %v865
    %v929 = vadd.f32 %v928, %v866
    %v930 = vrot.slane %v929, 4
    %v931 = vadd.f32 %v929, %v930
    %v932 = vrot.slane %v931, 2
    %v933 = vadd.f32 %v931, %v932
    %v934 = vrot.slane %v933, 1
    %v935 = vadd.f32 %v933, %v934
    %v936 = vadd.f32 %v802, %v935
    %937 = vst [vmem:[#allocation8 + $0x1] sm:$0x1] %v936
    // Predicated region
    $region22: #{tpu_custom_call.1} parent=1 // pred_check
      _
    $region23: #{tpu_custom_call.1} parent=1 // pred_check_branch
      %939 = sbr.rel (0) target = $region25
    $region24: #{tpu_custom_call.1} parent=1 // pred_region
      %s940 = sadd.s32 0, 0
      %s941 = smul.u32 64, %s940
      %s943 = ssub.s32 8192, 8192
      %944 = vsyncadd [#allocation4], %s943
      %s945 = smul.addr %s941, 128
      %s946 = scalar_lea.hbm %s2, %s945
      %s947 = sshll.u32 [#allocation7], 4
      %s948 = int_to_ptr.vmem [resolvable:$true] %s947
      %953 = dma.vmem_to_hbm [thread:$0]  %s948, 8192, %s946, [#allocation4], 128, 128, 8
    $region25: #{tpu_custom_call.1} parent=1 // pred_fallthru
      _
    // Predicated region
    $region26: #{tpu_custom_call.1} parent=1 // pred_check
      _
    $region27: #{tpu_custom_call.1} parent=1 // pred_check_branch
      %955 = sbr.rel (0) target = $region29
    $region28: #{tpu_custom_call.1} parent=1 // pred_region
      %s957 = ssub.s32 128, 128
      %958 = vsyncadd [#allocation9], %s957
      %s960 = sshll.u32 [#allocation8], 4
      %s961 = int_to_ptr.vmem [resolvable:$true] %s960
      %963 = dma.vmem_to_hbm [thread:$0]  %s961, 128, %s3, [#allocation9]
    $region29: #{tpu_custom_call.1} parent=1 // pred_fallthru
      _
    // Predicated region
    $region30: #{tpu_custom_call.1} parent=1 // pred_check
      _
    $region31: #{tpu_custom_call.1} parent=1 // pred_check_branch
      %965 = sbr.rel (0) target = $region33
    $region32: #{tpu_custom_call.1} parent=1 // pred_region
      %966 = dma.done [#allocation4], 8192
    $region33: #{tpu_custom_call.1} parent=1 // pred_fallthru
      _
    // Predicated region
    $region34: #{tpu_custom_call.1} parent=1 // pred_check
      _
    $region35: #{tpu_custom_call.1} parent=1 // pred_check_branch
      %968 = sbr.rel (0) target = $region37
    $region36: #{tpu_custom_call.1} parent=1 // pred_region
      %969 = dma.done [#allocation9], 128
    $region37: #{tpu_custom_call.1} parent=1 // pred_fallthru
      _
    %970 = vsyncpa [#allocation3], 1
    %971 = vsyncpa [#allocation6], 1
    %972 = vsyncpa [#allocation4], 1
    %973 = vsyncpa [#allocation9], 1

</llo_original>
